<compile_context>
chip_gen: v7x
topology: tpu7x:2x2x1
jax: 0.10.0
libtpu: 0.0.40
codegen_flags: <defaults>
</compile_context>

<pallas_src>
import jax
import jax.numpy as jnp
from jax.experimental import pallas as pl
from jax.experimental.pallas import tpu as pltpu


def _round_up(x, m):
    return -(-x // m) * m


def _sparse_to_dense_kernel(cs_ref, cc_ref, gflat_ref, featsT_ref, out_ref,
                            acc_ref):
    # cs_ref    : (B,) int32 SMEM -- first point-chunk of batch b (batch-sorted)
    # cc_ref    : (B,) int32 SMEM -- number of point-chunks covering batch b
    # gflat_ref : (TILE_K, 1) int32 -- global flat index b*hw_pad + y*W + x, -1 pad
    # featsT_ref: (C, TILE_K) float -- features, transposed, batch-sorted
    # out_ref   : (1, C, TILE_HW)   -- dense output tile for (batch b, hw tile h)
    # acc_ref   : (C, TILE_HW) f32  -- VMEM accumulator, resident across chunk axis
    b = pl.program_id(0)
    h = pl.program_id(1)
    k = pl.program_id(2)
    n_hw_tiles = pl.num_programs(1)
    tile_k = gflat_ref.shape[0]
    tile_hw = out_ref.shape[-1]

    @pl.when(k == 0)
    def _init():
        acc_ref[...] = jnp.zeros_like(acc_ref)

    # Only the point-chunks that can contain batch b's points do any work;
    # the remaining (skipped) grid steps are cheap no-ops.
    @pl.when(k < cc_ref[b])
    def _scatter():
        # flat offset of the first spatial position covered by this output tile
        tile_off = (b * n_hw_tiles + h) * tile_hw
        # small (TILE_K, 1) VPU op instead of adding the offset to the big iota
        local = gflat_ref[...] - tile_off
        pos = jax.lax.broadcasted_iota(jnp.int32, (tile_k, tile_hw), 1)
        # one-hot scatter matrix: onehot[n, p] = 1 iff point n lands at tile pos p
        onehot = (local == pos).astype(featsT_ref.dtype)
        # (C, TILE_K) @ (TILE_K, TILE_HW) on the MXU; f32 accumulation
        acc_ref[...] += jnp.dot(featsT_ref[...], onehot,
                                preferred_element_type=jnp.float32)

    @pl.when(k == pl.num_programs(2) - 1)
    def _finalize():
        out_ref[0, :, :] = acc_ref[...].astype(out_ref.dtype)


def sparse_to_dense(coords, feats, batch_size, spatial_shape,
                    max_tile_hw=2048, max_tile_k=256):
    """coords: (N, 3) int32 rows [batch, y, x]; feats: (N, C) float.

    Returns the dense tensor of shape (B, C, H, W), i.e. the first element of
    ME.SparseTensor.dense().
    """
    H, W = spatial_shape
    N, C = feats.shape
    hw = H * W

    # --- tile sizes: lane-dense (128-multiple) HW tiles, 128-aligned point
    # chunks.  max_tile_k * max_tile_hw * 4B (onehot) stays ~2 MiB, well inside
    # v7x's 64 MiB VMEM and trivially inside v5e/v6e's 128 MiB.
    tile_hw = min(max_tile_hw, _round_up(hw, 128))
    hw_pad = _round_up(hw, tile_hw)
    n_hw_tiles = hw_pad // tile_hw

    tile_k = min(max_tile_k, _round_up(max(N, 1), 128))
    n_pad = _round_up(max(N, 1), tile_k)
    n_chunks = n_pad // tile_k

    # --- sort points by batch so each batch's points are contiguous chunks
    bidx = coords[:, 0].astype(jnp.int32)
    order = jnp.argsort(bidx, stable=True)
    coords_s = coords[order].astype(jnp.int32)
    feats_s = feats[order]

    # global flat index encoded against the *padded* spatial extent, so points
    # of other batches can never alias a position inside batch b's slab.
    # TODO(synk): int32 overflows if batch_size * hw_pad >= 2**31.
    gflat = (coords_s[:, 0] * hw_pad + coords_s[:, 1] * W + coords_s[:, 2])

    # per-batch point ranges in sorted order -> point-chunk start/count
    counts = jnp.zeros((batch_size,), jnp.int32).at[coords_s[:, 0]].add(1)
    starts = jnp.concatenate(
        [jnp.zeros((1,), jnp.int32), jnp.cumsum(counts)[:-1].astype(jnp.int32)])
    ends = starts + counts
    chunk_start = jnp.minimum(starts // tile_k, n_chunks - 1).astype(jnp.int32)
    chunk_count = jnp.where(
        counts > 0, (-(-ends // tile_k)) - starts // tile_k, 0).astype(jnp.int32)

    # pad points to a whole number of chunks; sentinel -1 never matches any pos
    gflat_p = jnp.full((n_pad, 1), -1, dtype=jnp.int32).at[:N, 0].set(gflat)
    featsT_p = jnp.zeros((C, n_pad), feats.dtype).at[:, :N].set(feats_s.T)

    def _chunk_idx(b, k, cs, cc):
        # clamp to the batch's own last useful chunk (in-bounds, avoids
        # redundant DMAs on the skipped trailing chunk steps)
        last = cs[b] + jnp.maximum(cc[b], 1) - 1
        return jnp.minimum(cs[b] + k, last)

    gflat_spec = pl.BlockSpec(
        (tile_k, 1), lambda b, h, k, cs, cc: (_chunk_idx(b, k, cs, cc), 0))
    featsT_spec = pl.BlockSpec(
        (C, tile_k), lambda b, h, k, cs, cc: (0, _chunk_idx(b, k, cs, cc)))
    out_spec = pl.BlockSpec(
        (1, C, tile_hw), lambda b, h, k, cs, cc: (b, 0, h))

    out = pl.pallas_call(
        _sparse_to_dense_kernel,
        out_shape=jax.ShapeDtypeStruct((batch_size, C, hw_pad), feats.dtype),
        grid_spec=pltpu.PrefetchScalarGridSpec(
            num_scalar_prefetch=2,
            grid=(batch_size, n_hw_tiles, n_chunks),
            in_specs=[gflat_spec, featsT_spec],
            out_specs=out_spec,
            scratch_shapes=[pltpu.VMEM((C, tile_hw), jnp.float32)]),
        compiler_params=pltpu.CompilerParams(
            dimension_semantics=("parallel", "parallel", "arbitrary"),
            vmem_limit_bytes=32 * 1024 * 1024),
    )(chunk_start, chunk_count, gflat_p, featsT_p)

    return out[:, :, :hw].reshape(batch_size, C, H, W)


if __name__ == "__main__":
    key = jax.random.PRNGKey(0)
    B, C, H, W = 2, 4, 16, 16
    N = 24  # number of non-zero (sparse) sites

    k_idx, k_feat = jax.random.split(key)

    # unique global sites -> unique (batch, y, x) coordinates
    gidx = jax.random.permutation(k_idx, B * H * W)[:N]
    b_idx = gidx // (H * W)
    y_idx = (gidx % (H * W)) // W
    x_idx = gidx % W
    coords = jnp.stack([b_idx, y_idx, x_idx], axis=1).astype(jnp.int32)  # (N, 3)

    feats = jax.random.normal(k_feat, (N, C), dtype=jnp.float32)          # (N, C)

    dense = sparse_to_dense(coords, feats, B, (H, W))
    dense = jax.block_until_ready(dense)

    # reference: plain JAX scatter
    ref = jnp.zeros((B, C, H, W), jnp.float32).at[b_idx, :, y_idx, x_idx].set(feats)

    assert dense.shape == (B, C, H, W)
    assert dense.dtype == jnp.float32
    assert jnp.allclose(dense, ref, atol=1e-6), "mismatch vs reference scatter"

    print("KERNEL_OK")
</pallas_src>

<mosaic_0001>
module attributes {stable_mosaic.version = 11 : i64} {
  func.func @_sparse_to_dense_kernel(%arg0: i32, %arg1: i32, %arg2: i32, %arg3: memref<2xi32, #tpu.memory_space<smem>>, %arg4: memref<2xi32, #tpu.memory_space<smem>>, %arg5: memref<128x1xi32, #tpu.memory_space<vmem>>, %arg6: memref<4x128xf32, #tpu.memory_space<vmem>>, %arg7: memref<1x4x256xf32, #tpu.memory_space<vmem>>, %arg8: memref<4x256xf32, #tpu.memory_space<vmem>>) attributes {dimension_semantics = [#tpu.dimension_semantics<parallel>, #tpu.dimension_semantics<parallel>, #tpu.dimension_semantics<arbitrary>], iteration_bounds = array<i64: 2, 1, 1>, scalar_prefetch = 2 : i64, scratch_operands = 1 : i64, tpu.core_type = #tpu.core_type<tc>, window_params = [{transform_indices = @transform_0, window_bounds = array<i64: 128, 1>}, {transform_indices = @transform_1, window_bounds = array<i64: 4, 128>}, {transform_indices = @transform_2, window_bounds = array<i64: 1, 4, 256>}]} {
    %c0_i32 = arith.constant 0 : i32
    %0 = arith.cmpi eq, %arg2, %c0_i32 : i32
    %1 = arith.extui %0 : i1 to i32
    %c0_i32_0 = arith.constant 0 : i32
    %2 = arith.cmpi ne, %1, %c0_i32_0 : i32
    scf.if %2 {
      %cst = arith.constant 0.000000e+00 : f32
      %11 = vector.broadcast %cst : f32 to vector<4x256xf32>
      %c0 = arith.constant 0 : index
      %c0_4 = arith.constant 0 : index
      %12 = vector.load %arg8[%c0, %c0_4] : memref<4x256xf32, #tpu.memory_space<vmem>>, vector<4x256xf32>
      tpu.vector_store %arg8[%c0, %c0_4], %11 {strides = array<i32>} : memref<4x256xf32, #tpu.memory_space<vmem>>, vector<4x256xf32>,
    } else {
    }
    %3 = arith.index_cast %arg0 : i32 to index
    %4 = memref.load %arg4[%3] : memref<2xi32, #tpu.memory_space<smem>>
    %5 = arith.cmpi slt, %arg2, %4 : i32
    %6 = arith.extui %5 : i1 to i32
    %c0_i32_1 = arith.constant 0 : i32
    %7 = arith.cmpi ne, %6, %c0_i32_1 : i32
    scf.if %7 {
      %c1_i32 = arith.constant 1 : i32
      %11 = arith.muli %arg0, %c1_i32 : i32
      %12 = arith.addi %11, %arg1 : i32
      %c256_i32 = arith.constant 256 : i32
      %13 = arith.muli %12, %c256_i32 : i32
      %c0 = arith.constant 0 : index
      %c0_4 = arith.constant 0 : index
      %14 = vector.load %arg5[%c0, %c0_4] : memref<128x1xi32, #tpu.memory_space<vmem>>, vector<128x1xi32>
      %15 = vector.broadcast %13 : i32 to vector<128x1xi32>
      %16 = arith.subi %14, %15 : vector<128x1xi32>
      %17 = tpu.iota {dimensions = array<i32: 1>} : vector<128x256xi32>
      %18 = vector.broadcast %16 : vector<128x1xi32> to vector<128x256xi32>
      %19 = arith.cmpi eq, %18, %17 : vector<128x256xi32>
      %20 = arith.extui %19 : vector<128x256xi1> to vector<128x256xi32>
      %21 = arith.sitofp %20 : vector<128x256xi32> to vector<128x256xf32>
      %c0_5 = arith.constant 0 : index
      %c0_6 = arith.constant 0 : index
      %22 = vector.load %arg8[%c0_5, %c0_6] : memref<4x256xf32, #tpu.memory_space<vmem>>, vector<4x256xf32>
      %c0_7 = arith.constant 0 : index
      %c0_8 = arith.constant 0 : index
      %23 = vector.load %arg6[%c0_7, %c0_8] : memref<4x128xf32, #tpu.memory_space<vmem>>, vector<4x128xf32>
      %cst = arith.constant dense<0.000000e+00> : vector<4x256xf32>
      %24 = tpu.matmul %23, %21, %cst {dimension_numbers = #tpu.dot_dimension_numbers<[1], [0], [0], [1], [0, 0, 1, 1], [], []>} : vector<4x128xf32>, vector<128x256xf32>, vector<4x256xf32> -> vector<4x256xf32>
      %25 = arith.addf %22, %24 : vector<4x256xf32>
      %c0_9 = arith.constant 0 : index
      %c0_10 = arith.constant 0 : index
      %26 = vector.load %arg8[%c0_9, %c0_10] : memref<4x256xf32, #tpu.memory_space<vmem>>, vector<4x256xf32>
      tpu.vector_store %arg8[%c0_9, %c0_10], %25 {strides = array<i32>} : memref<4x256xf32, #tpu.memory_space<vmem>>, vector<4x256xf32>,
    } else {
    }
    %c0_i32_2 = arith.constant 0 : i32
    %8 = arith.cmpi eq, %arg2, %c0_i32_2 : i32
    %9 = arith.extui %8 : i1 to i32
    %c0_i32_3 = arith.constant 0 : i32
    %10 = arith.cmpi ne, %9, %c0_i32_3 : i32
    scf.if %10 {
      %c0 = arith.constant 0 : index
      %c0_4 = arith.constant 0 : index
      %11 = vector.load %arg8[%c0, %c0_4] : memref<4x256xf32, #tpu.memory_space<vmem>>, vector<4x256xf32>
      %c0_5 = arith.constant 0 : index
      %c0_6 = arith.constant 0 : index
      %c0_7 = arith.constant 0 : index
      %12 = vector.load %arg7[%c0_5, %c0_6, %c0_7] : memref<1x4x256xf32, #tpu.memory_space<vmem>>, vector<1x4x256xf32>
      %13 = vector.shape_cast %12 : vector<1x4x256xf32> to vector<4x256xf32>
      %14 = vector.shape_cast %11 : vector<4x256xf32> to vector<1x4x256xf32>
      tpu.vector_store %arg7[%c0_5, %c0_6, %c0_7], %14 {strides = array<i32>} : memref<1x4x256xf32, #tpu.memory_space<vmem>>, vector<1x4x256xf32>,
    } else {
    }
    return
  }
  func.func @transform_0(%arg0: i32, %arg1: i32, %arg2: i32, %arg3: memref<2xi32, #tpu.memory_space<smem>>, %arg4: memref<2xi32, #tpu.memory_space<smem>>) -> (i32, i32) {
    %0 = arith.index_cast %arg0 : i32 to index
    %1 = memref.load %arg3[%0] : memref<2xi32, #tpu.memory_space<smem>>
    %2 = arith.index_cast %arg0 : i32 to index
    %3 = memref.load %arg4[%2] : memref<2xi32, #tpu.memory_space<smem>>
    %c1_i32 = arith.constant 1 : i32
    %4 = arith.maxsi %3, %c1_i32 : i32
    %5 = arith.addi %1, %4 : i32
    %c1_i32_0 = arith.constant 1 : i32
    %6 = arith.subi %5, %c1_i32_0 : i32
    %7 = arith.index_cast %arg0 : i32 to index
    %8 = memref.load %arg3[%7] : memref<2xi32, #tpu.memory_space<smem>>
    %9 = arith.addi %8, %arg2 : i32
    %10 = arith.minsi %9, %6 : i32
    %c0_i32 = arith.constant 0 : i32
    %c0_i32_1 = arith.constant 0 : i32
    return %10, %c0_i32 : i32, i32
  }
  func.func @transform_1(%arg0: i32, %arg1: i32, %arg2: i32, %arg3: memref<2xi32, #tpu.memory_space<smem>>, %arg4: memref<2xi32, #tpu.memory_space<smem>>) -> (i32, i32) {
    %0 = arith.index_cast %arg0 : i32 to index
    %1 = memref.load %arg3[%0] : memref<2xi32, #tpu.memory_space<smem>>
    %2 = arith.index_cast %arg0 : i32 to index
    %3 = memref.load %arg4[%2] : memref<2xi32, #tpu.memory_space<smem>>
    %c1_i32 = arith.constant 1 : i32
    %4 = arith.maxsi %3, %c1_i32 : i32
    %5 = arith.addi %1, %4 : i32
    %c1_i32_0 = arith.constant 1 : i32
    %6 = arith.subi %5, %c1_i32_0 : i32
    %7 = arith.index_cast %arg0 : i32 to index
    %8 = memref.load %arg3[%7] : memref<2xi32, #tpu.memory_space<smem>>
    %9 = arith.addi %8, %arg2 : i32
    %10 = arith.minsi %9, %6 : i32
    %c0_i32 = arith.constant 0 : i32
    %c0_i32_1 = arith.constant 0 : i32
    return %c0_i32, %10 : i32, i32
  }
  func.func @transform_2(%arg0: i32, %arg1: i32, %arg2: i32, %arg3: memref<2xi32, #tpu.memory_space<smem>>, %arg4: memref<2xi32, #tpu.memory_space<smem>>) -> (i32, i32, i32) {
    %c0_i32 = arith.constant 0 : i32
    %c0_i32_0 = arith.constant 0 : i32
    return %arg0, %c0_i32, %arg1 : i32, i32, i32
  }
}

</mosaic_0001>

<llo_original>
// kernel: tpu_custom_call.1
$region0: #{tpu_custom_call.1}
  #allocation0 [shape = 'u32[]', space=smem, size = 0x4, offset = 0x4, fixed_abs, tag = 'smem constant byte address 0x4 - core index']
  #allocation1 [shape = 'u32[144,128]{1,0:T(1,128)}', space=vmem, size = 0x12000, scoped, tag = 'internal scratch']
  #allocation2 [shape = 'f32[4,256]{1,0:T(4,128)}', space=vmem, size = 0x1000, scoped, tag = 'scratch operand']
  #allocation3 [shape = 's32[1]{0}', space=sflag, size = 0x4, scoped, tag = 'scoped memory for tpu_custom_call.1']
  #allocation4 [shape = 'u8[512]{0}', space=smem, size = 0x200, scoped, tag = 'prefetched SMEM operand 0']
  #allocation5 [shape = 'u8[512]{0}', space=smem, size = 0x200, scoped, tag = 'prefetched SMEM operand 1']
  %s0 = inlined_call_operand.vmem [shape: s32[2], index: 0, kind: input, shape index: {}]
  %s1 = inlined_call_operand.vmem [shape: s32[2], index: 1, kind: input, shape index: {}]
  %s2 = inlined_call_operand.vmem [shape: s32[128,1], index: 2, kind: input, shape index: {}]
  %s3 = inlined_call_operand.vmem [shape: f32[4,128], index: 3, kind: input, shape index: {}]
  %s4 = inlined_call_operand.hbm [shape: f32[2,4,256], index: 4, kind: output, shape index: {}]
  %s5 = sld [smem:[#allocation0]]
  $region53: #{tpu_custom_call.1} parent=0
    _
  %s7 = ssub.s32 1, %s5
  %s8 = scalar_select 0, %s7, %s5
  %s9 = sshll.u32 %s0, 4
  %s10 = int_to_ptr.vmem [resolvable:$true] %s9
  %12 = dma.vmem_to_smem %s10, 16, [#allocation4], [#allocation3]
  %s13 = sshll.u32 %s1, 4
  %s14 = int_to_ptr.vmem [resolvable:$true] %s13
  %16 = dma.vmem_to_smem %s14, 16, [#allocation5], [#allocation3]
  %17 = dma.done [#allocation3], 32
  %18 = sfence
  $region1: #{tpu_custom_call.1} parent=0
    #allocation6 [shape = 'u8[8192]{0}', space=vmem, size = 0x2000, scoped, tag = 'output window, operand 0']
    #allocation7 [shape = 's32[2]{0}', space=sflag, size = 0x8, scoped, tag = 'scoped memory for tpu_custom_call.1']
    %19 = vsyncpa [#allocation7], 0
    %s20 = scalar_lea.sflag [#allocation7], 1
    %21 = vsyncpa %s20, 0
    loop: start=0, step=1, limit=4
    $region2: #{tpu_custom_call.1} parent=1 // loop_pre_header
      _
    $region3: #{tpu_custom_call.1} parent=1 // loop_header
      %s23 = sphi 0, %s27
      %p24 = scmp.ge.s32.totalorder %s23, 4
      %s30 = sphi 0, %s49
      %s31 = sphi 0, %s45
      %s32 = sphi 0, %s41
      %s33 = sphi 0, %s30
      %s34 = sphi 0, %s31
      %s35 = sphi 0, %s32
      %s36 = sphi 0, %s33
      %s37 = sphi 0, %s34
      %s38 = sphi 0, %s35
      %s70 = sphi 0, %s72
      %s73 = sphi 0, %s70
      %s74 = sphi 0, %s73
      %s90 = sphi 0, %s74
      %s114 = sphi 0, %s116
      %s117 = sphi 0, %s114
      %s118 = sphi 0, %s117
      %s134 = sphi 0, %s118
      %s142 = sphi 0, %s144
      %s145 = sphi 0, %s142
      %s146 = sphi 0, %s145
      %s162 = sphi 0, %s146
    $region4: #{tpu_custom_call.1} parent=1 // loop_header_branch
      %26 = sbr.rel (%p24) target = $region8
    $region5: #{tpu_custom_call.1} parent=1 // loop_body
      %s28 = ssub.s32 %s23, 1
      %s29 = ssub.s32 %s23, 2
      %s39 = sadd.s32 1, %s32
      %p40 = scmp.ge.s32.totalorder %s39, 1
      %s41 = scalar_select %p40, 0, %s39
      %s42 = sadd.s32 1, %s31
      %s43 = scalar_select %p40, %s42, %s31
      %p44 = scmp.ge.s32.totalorder %s43, 1
      %s45 = scalar_select %p44, 0, %s43
      %s46 = sadd.s32 1, %s30
      %s47 = scalar_select %p44, %s46, %s30
      %p48 = scmp.ge.s32.totalorder %s47, 2
      %s49 = scalar_select %p48, 0, %s47
      %s50 = sld [smem:[#allocation4 + %s30]]
      %s51 = sld [smem:[#allocation5 + %s30]]
      %p52 = scmp.gt.s32.totalorder %s51, 1
      %s53 = scalar_select %p52, %s51, 1
      %s54 = sadd.s32 %s50, %s53
      %s55 = ssub.s32 %s54, 1
      %s56 = sadd.s32 %s50, %s32
      %p57 = scmp.lt.s32.totalorder %s56, %s55
      %s58 = scalar_select %p57, %s56, %s55
      %s59 = sld [smem:[#allocation4 + %s49]]
      %s60 = sld [smem:[#allocation5 + %s49]]
      %p61 = scmp.gt.s32.totalorder %s60, 1
      %s62 = scalar_select %p61, %s60, 1
      %s63 = sadd.s32 %s59, %s62
      %s64 = ssub.s32 %s63, 1
      %s65 = sadd.s32 %s59, %s41
      %p66 = scmp.lt.s32.totalorder %s65, %s64
      %s67 = scalar_select %p66, %s65, %s64
      %s68 = ssub.s32 %s58, %s67
      %p69 = scmp.eq.s32.totalorder %s68, 0
      %s71 = sadd.s32 %s70, 1
      %s72 = scalar_select %p69, %s70, %s71
      %p75 = pneg %p69
      %p76 = scmp.eq.s32.totalorder %s23, 1
      %p77 = por %p75, %p76
      %p78 = scmp.ne.s32.totalorder %s70, %s73
      %p79 = scmp.eq.s32.totalorder %s23, 0
      %p80 = por %p78, %p79
      %p81 = scmp.ne.s32.totalorder %s70, %s73
      %p82 = scmp.eq.s32.totalorder %s28, 1
      %p83 = por %p81, %p82
      %p84 = scmp.ne.s32.totalorder %s73, %s74
      %p85 = scmp.eq.s32.totalorder %s28, 0
      %p86 = por %p84, %p85
      %p87 = scmp.ne.s32.totalorder %s73, %s74
      %p88 = scmp.eq.s32.totalorder %s29, 1
      %p89 = por %p87, %p88
      %p91 = scmp.ne.s32.totalorder %s74, %s90
      %p92 = scmp.eq.s32.totalorder %s29, 0
      %p93 = por %p91, %p92
      %s94 = sld [smem:[#allocation4 + %s30]]
      %s95 = sld [smem:[#allocation5 + %s30]]
      %p96 = scmp.gt.s32.totalorder %s95, 1
      %s97 = scalar_select %p96, %s95, 1
      %s98 = sadd.s32 %s94, %s97
      %s99 = ssub.s32 %s98, 1
      %s100 = sadd.s32 %s94, %s32
      %p101 = scmp.lt.s32.totalorder %s100, %s99
      %s102 = scalar_select %p101, %s100, %s99
      %s103 = sld [smem:[#allocation4 + %s49]]
      %s104 = sld [smem:[#allocation5 + %s49]]
      %p105 = scmp.gt.s32.totalorder %s104, 1
      %s106 = scalar_select %p105, %s104, 1
      %s107 = sadd.s32 %s103, %s106
      %s108 = ssub.s32 %s107, 1
      %s109 = sadd.s32 %s103, %s41
      %p110 = scmp.lt.s32.totalorder %s109, %s108
      %s111 = scalar_select %p110, %s109, %s108
      %s112 = ssub.s32 %s102, %s111
      %p113 = scmp.eq.s32.totalorder %s112, 0
      %s115 = sadd.s32 %s114, 1
      %s116 = scalar_select %p113, %s114, %s115
      %p119 = pneg %p113
      %p120 = scmp.eq.s32.totalorder %s23, 1
      %p121 = por %p119, %p120
      %p122 = scmp.ne.s32.totalorder %s114, %s117
      %p123 = scmp.eq.s32.totalorder %s23, 0
      %p124 = por %p122, %p123
      %p125 = scmp.ne.s32.totalorder %s114, %s117
      %p126 = scmp.eq.s32.totalorder %s28, 1
      %p127 = por %p125, %p126
      %p128 = scmp.ne.s32.totalorder %s117, %s118
      %p129 = scmp.eq.s32.totalorder %s28, 0
      %p130 = por %p128, %p129
      %p131 = scmp.ne.s32.totalorder %s117, %s118
      %p132 = scmp.eq.s32.totalorder %s29, 1
      %p133 = por %p131, %p132
      %p135 = scmp.ne.s32.totalorder %s118, %s134
      %p136 = scmp.eq.s32.totalorder %s29, 0
      %p137 = por %p135, %p136
      %s138 = ssub.s32 %s30, %s49
      %s139 = ssub.s32 %s31, %s45
      %s140 = sor.u32 %s138, %s139
      %p141 = scmp.eq.s32.totalorder %s140, 0
      %s143 = sadd.s32 %s142, 1
      %s144 = scalar_select %p141, %s142, %s143
      %p147 = pneg %p141
      %p148 = scmp.eq.s32.totalorder %s23, 1
      %p149 = por %p147, %p148
      %p150 = scmp.ne.s32.totalorder %s142, %s145
      %p151 = scmp.eq.s32.totalorder %s23, 0
      %p152 = por %p150, %p151
      %p153 = scmp.ne.s32.totalorder %s142, %s145
      %p154 = scmp.eq.s32.totalorder %s28, 1
      %p155 = por %p153, %p154
      %p156 = scmp.ne.s32.totalorder %s145, %s146
      %p157 = scmp.eq.s32.totalorder %s28, 0
      %p158 = por %p156, %p157
      %p159 = scmp.ne.s32.totalorder %s145, %s146
      %p160 = scmp.eq.s32.totalorder %s29, 1
      %p161 = por %p159, %p160
      %p163 = scmp.ne.s32.totalorder %s146, %s162
      %p164 = scmp.eq.s32.totalorder %s29, 0
      %p165 = por %p163, %p164
      %p166 = scmp.le.s32.totalorder 1, %s23
      %p167 = scmp.lt.s32.totalorder %s23, 3
      %p168 = pnand %p166, %p167
      %p169 = pneg %p168
      // Predicated region
      $region9: #{tpu_custom_call.1} parent=5 // pred_check
        _
      $region10: #{tpu_custom_call.1} parent=5 // pred_check_branch
        %171 = sbr.rel (%p168) target = $region12
      $region11: #{tpu_custom_call.1} parent=5 // pred_region
        %s172 = ssub.s32 %s23, 1
      $region12: #{tpu_custom_call.1} parent=5 // pred_fallthru
        _
      %p173 = scmp.lt.s32.totalorder %s23, 2
      // Predicated region
      $region13: #{tpu_custom_call.1} parent=5 // pred_check
        %p174 = pneg %p173
      $region14: #{tpu_custom_call.1} parent=5 // pred_check_branch
        %176 = sbr.rel (%p174) target = $region16
      $region15: #{tpu_custom_call.1} parent=5 // pred_region
        // Predicated region
        $region17: #{tpu_custom_call.1} parent=15 // pred_check
          %p177 = pneg %p80
        $region18: #{tpu_custom_call.1} parent=15 // pred_check_branch
          %179 = sbr.rel (%p177) target = $region20
        $region19: #{tpu_custom_call.1} parent=15 // pred_region
          %s180 = sld [smem:[#allocation4 + %s30]]
          %s181 = sld [smem:[#allocation5 + %s30]]
          %p182 = scmp.gt.s32.totalorder %s181, 1
          %s183 = scalar_select %p182, %s181, 1
          %s184 = sadd.s32 %s180, %s183
          %s185 = ssub.s32 %s184, 1
          %s186 = sadd.s32 %s180, %s32
          %p187 = scmp.lt.s32.totalorder %s186, %s185
          %s188 = scalar_select %p187, %s186, %s185
          %s189 = smul.u32 16, %s188
          %p190 = scmp.lt.s32.totalorder %s189, 15
          %s191 = scalar_select %p190, %s189, 15
          %s192 = smul.addr %s191, 8
          %s193 = scalar_lea.vmem %s2, %s192
          %s194 = sld [smem:[#allocation4 + %s30]]
          %s195 = sld [smem:[#allocation5 + %s30]]
          %p196 = scmp.gt.s32.totalorder %s195, 1
          %s197 = scalar_select %p196, %s195, 1
          %s198 = sadd.s32 %s194, %s197
          %s199 = ssub.s32 %s198, 1
          %s200 = sadd.s32 %s194, %s32
          %p201 = scmp.lt.s32.totalorder %s200, %s199
          %s202 = scalar_select %p201, %s200, %s199
          %s203 = smul.u32 16, %s202
        $region20: #{tpu_custom_call.1} parent=15 // pred_fallthru
          _
        // Predicated region
        $region21: #{tpu_custom_call.1} parent=15 // pred_check
          %p204 = pneg %p124
        $region22: #{tpu_custom_call.1} parent=15 // pred_check_branch
          %206 = sbr.rel (%p204) target = $region24
        $region23: #{tpu_custom_call.1} parent=15 // pred_region
          %s207 = sld [smem:[#allocation4 + %s30]]
          %s208 = sld [smem:[#allocation5 + %s30]]
          %p209 = scmp.gt.s32.totalorder %s208, 1
          %s210 = scalar_select %p209, %s208, 1
          %s211 = sadd.s32 %s207, %s210
          %s212 = ssub.s32 %s211, 1
          %s213 = sadd.s32 %s207, %s32
          %p214 = scmp.lt.s32.totalorder %s213, %s212
          %s215 = scalar_select %p214, %s213, %s212
          %p216 = scmp.lt.s32.totalorder %s215, 0
          %s217 = scalar_select %p216, %s215, 0
          %s218 = smul.addr %s217, 4
          %s219 = scalar_lea.vmem %s3, %s218
          %s220 = sld [smem:[#allocation4 + %s30]]
          %s221 = sld [smem:[#allocation5 + %s30]]
          %p222 = scmp.gt.s32.totalorder %s221, 1
          %s223 = scalar_select %p222, %s221, 1
          %s224 = sadd.s32 %s220, %s223
          %s225 = ssub.s32 %s224, 1
          %s226 = sadd.s32 %s220, %s32
          %p227 = scmp.lt.s32.totalorder %s226, %s225
          %s228 = scalar_select %p227, %s226, %s225
        $region24: #{tpu_custom_call.1} parent=15 // pred_fallthru
          _
      $region16: #{tpu_custom_call.1} parent=5 // pred_fallthru
        _
      %p229 = scmp.le.s32.totalorder 1, %s23
      %p230 = scmp.lt.s32.totalorder %s23, 3
      %p231 = pnand %p229, %p230
      %p232 = pneg %p231
      // Predicated region
      $region25: #{tpu_custom_call.1} parent=5 // pred_check
        _
      $region26: #{tpu_custom_call.1} parent=5 // pred_check_branch
        %234 = sbr.rel (%p231) target = $region28
      $region27: #{tpu_custom_call.1} parent=5 // pred_region
        %s235 = ssub.s32 %s23, 1
        %s236 = sld [smem:[#allocation4 + %s33]]
        %s237 = sld [smem:[#allocation5 + %s33]]
        %p238 = scmp.gt.s32.totalorder %s237, 1
        %s239 = scalar_select %p238, %s237, 1
        %s240 = sadd.s32 %s236, %s239
        %s241 = ssub.s32 %s240, 1
        %s242 = sadd.s32 %s236, %s35
        %p243 = scmp.lt.s32.totalorder %s242, %s241
        %s244 = scalar_select %p243, %s242, %s241
        %s245 = smul.u32 16, %s244
        %p246 = scmp.lt.s32.totalorder %s245, 15
        %s247 = scalar_select %p246, %s245, 15
        %s248 = smul.addr %s247, 8
        %s249 = scalar_lea.vmem %s2, %s248
        %p250 = pneg %p86
        %p251 = pneg %p83
        %s252 = sld [smem:[#allocation4 + %s33]]
        %s253 = sld [smem:[#allocation5 + %s33]]
        %p254 = scmp.gt.s32.totalorder %s253, 1
        %s255 = scalar_select %p254, %s253, 1
        %s256 = sadd.s32 %s252, %s255
        %s257 = ssub.s32 %s256, 1
        %s258 = sadd.s32 %s252, %s35
        %p259 = scmp.lt.s32.totalorder %s258, %s257
        %s260 = scalar_select %p259, %s258, %s257
        %p261 = scmp.lt.s32.totalorder %s260, 0
        %s262 = scalar_select %p261, %s260, 0
        %s263 = smul.addr %s262, 4
        %s264 = scalar_lea.vmem %s3, %s263
        %p265 = pneg %p130
        %p266 = pneg %p127
        %p267 = pneg %p158
        %p268 = pneg %p155
        %s269 = sand.u32 %s145, 1
        %s270 = scalar_lea.sflag [#allocation7], %s269
        %s271 = sand.u32 %s145, 1
        %s272 = smul.addr %s271, 8
        %s273 = scalar_lea.vmem [#allocation6], %s272
        %s274 = sld [smem:[#allocation4 + %s33]]
        %s275 = sld [smem:[#allocation5 + %s33]]
        %p276 = scmp.gt.s32.totalorder %s275, 1
        %s277 = scalar_select %p276, %s275, 1
        %s278 = sadd.s32 %s274, %s277
        %s279 = ssub.s32 %s278, 1
        %s280 = sadd.s32 %s274, %s35
        %p281 = scmp.lt.s32.totalorder %s280, %s279
        %s282 = scalar_select %p281, %s280, %s279
        %s283 = smul.u32 16, %s282
        %p284 = scmp.lt.s32.totalorder %s283, 15
        %s285 = scalar_select %p284, %s283, 15
        %s286 = smul.addr %s285, 8
        %s287 = scalar_lea.vmem %s2, %s286
        %s288 = sld [smem:[#allocation4 + %s33]]
        %s289 = sld [smem:[#allocation5 + %s33]]
        %p290 = scmp.gt.s32.totalorder %s289, 1
        %s291 = scalar_select %p290, %s289, 1
        %s292 = sadd.s32 %s288, %s291
        %s293 = ssub.s32 %s292, 1
        %s294 = sadd.s32 %s288, %s35
        %p295 = scmp.lt.s32.totalorder %s294, %s293
        %s296 = scalar_select %p295, %s294, %s293
        %s297 = smul.u32 16, %s296
        %s298 = sld [smem:[#allocation4 + %s33]]
        %s299 = sld [smem:[#allocation5 + %s33]]
        %p300 = scmp.gt.s32.totalorder %s299, 1
        %s301 = scalar_select %p300, %s299, 1
        %s302 = sadd.s32 %s298, %s301
        %s303 = ssub.s32 %s302, 1
        %s304 = sadd.s32 %s298, %s35
        %p305 = scmp.lt.s32.totalorder %s304, %s303
        %s306 = scalar_select %p305, %s304, %s303
        %p307 = scmp.lt.s32.totalorder %s306, 0
        %s308 = scalar_select %p307, %s306, 0
        %s309 = smul.addr %s308, 4
        %s310 = scalar_lea.vmem %s3, %s309
        %s311 = sld [smem:[#allocation4 + %s33]]
        %s312 = sld [smem:[#allocation5 + %s33]]
        %p313 = scmp.gt.s32.totalorder %s312, 1
        %s314 = scalar_select %p313, %s312, 1
        %s315 = sadd.s32 %s311, %s314
        %s316 = ssub.s32 %s315, 1
        %s317 = sadd.s32 %s311, %s35
        %p318 = scmp.lt.s32.totalorder %s317, %s316
        %s319 = scalar_select %p318, %s317, %s316
        %s320 = smul.u32 2, %s34
        %p321 = scmp.eq.s32.totalorder %s35, 0
        // Predicated region
        $region29: #{tpu_custom_call.1} parent=27 // pred_check
          %p322 = pneg %p321
        $region30: #{tpu_custom_call.1} parent=27 // pred_check_branch
          %324 = sbr.rel (%p322) target = $region32
        $region31: #{tpu_custom_call.1} parent=27 // pred_region
          %325 = vst [vmem:[#allocation2] sm:$0xff] 0.0
        $region32: #{tpu_custom_call.1} parent=27 // pred_fallthru
          _
        %s326 = sld [smem:[#allocation5 + %s33]]
        %p327 = scmp.lt.s32.totalorder %s35, %s326
        // Predicated region
        $region33: #{tpu_custom_call.1} parent=27 // pred_check
          %p328 = pneg %p327
        $region34: #{tpu_custom_call.1} parent=27 // pred_check_branch
          %330 = sbr.rel (%p328) target = $region36
        $region35: #{tpu_custom_call.1} parent=27 // pred_region
          %s331 = sadd.s32 %s33, %s34
          %s332 = smul.u32 %s331, 256
          %v333 = vld [vmem:[%s287] sm:$0xff]
          %v334 = vld [vmem:[%s287 + $0x8] sm:$0xff]
          %v335 = vld [vmem:[%s287 + $0x10] sm:$0xff]
          %v336 = vld [vmem:[%s287 + $0x18] sm:$0xff]
          %v337 = vld [vmem:[%s287 + $0x20] sm:$0xff]
          %v338 = vld [vmem:[%s287 + $0x28] sm:$0xff]
          %v339 = vld [vmem:[%s287 + $0x30] sm:$0xff]
          %v340 = vld [vmem:[%s287 + $0x38] sm:$0xff]
          %v341 = vld [vmem:[%s287 + $0x40] sm:$0xff]
          %v342 = vld [vmem:[%s287 + $0x48] sm:$0xff]
          %v343 = vld [vmem:[%s287 + $0x50] sm:$0xff]
          %v344 = vld [vmem:[%s287 + $0x58] sm:$0xff]
          %v345 = vld [vmem:[%s287 + $0x60] sm:$0xff]
          %v346 = vld [vmem:[%s287 + $0x68] sm:$0xff]
          %v347 = vld [vmem:[%s287 + $0x70] sm:$0xff]
          %v348 = vld [vmem:[%s287 + $0x78] sm:$0xff]
          %v349 = vstv %s332
          %v350 = vsub.s32 %v333, %v349
          %v351 = vsub.s32 %v334, %v349
          %v352 = vsub.s32 %v335, %v349
          %v353 = vsub.s32 %v336, %v349
          %v354 = vsub.s32 %v337, %v349
          %v355 = vsub.s32 %v338, %v349
          %v356 = vsub.s32 %v339, %v349
          %v357 = vsub.s32 %v340, %v349
          %v358 = vsub.s32 %v341, %v349
          %v359 = vsub.s32 %v342, %v349
          %v360 = vsub.s32 %v343, %v349
          %v361 = vsub.s32 %v344, %v349
          %v362 = vsub.s32 %v345, %v349
          %v363 = vsub.s32 %v346, %v349
          %v364 = vsub.s32 %v347, %v349
          %v365 = vsub.s32 %v348, %v349
          %v366 = vlaneseq
          %v367 = vand.u32 %v366, 127
          %v368 = vadd.s32 %v367, 128
          %369 = vset.pattern.permute.xlu0 0
          %370 = vperm.xlu0 %369, %v350
          %v371 = vpop.permute.xlu0 %370
          %372 = vset.pattern.permute.xlu0 0
          %373 = vperm.xlu0 %372, %v351
          %v374 = vpop.permute.xlu0 %373
          %375 = vset.pattern.permute.xlu0 0
          %376 = vperm.xlu0 %375, %v352
          %v377 = vpop.permute.xlu0 %376
          %378 = vset.pattern.permute.xlu0 0
          %379 = vperm.xlu0 %378, %v353
          %v380 = vpop.permute.xlu0 %379
          %381 = vset.pattern.permute.xlu0 0
          %382 = vperm.xlu0 %381, %v354
          %v383 = vpop.permute.xlu0 %382
          %384 = vset.pattern.permute.xlu0 0
          %385 = vperm.xlu0 %384, %v355
          %v386 = vpop.permute.xlu0 %385
          %387 = vset.pattern.permute.xlu0 0
          %388 = vperm.xlu0 %387, %v356
          %v389 = vpop.permute.xlu0 %388
          %390 = vset.pattern.permute.xlu0 0
          %391 = vperm.xlu0 %390, %v357
          %v392 = vpop.permute.xlu0 %391
          %393 = vset.pattern.permute.xlu0 0
          %394 = vperm.xlu0 %393, %v358
          %v395 = vpop.permute.xlu0 %394
          %396 = vset.pattern.permute.xlu0 0
          %397 = vperm.xlu0 %396, %v359
          %v398 = vpop.permute.xlu0 %397
          %399 = vset.pattern.permute.xlu0 0
          %400 = vperm.xlu0 %399, %v360
          %v401 = vpop.permute.xlu0 %400
          %402 = vset.pattern.permute.xlu0 0
          %403 = vperm.xlu0 %402, %v361
          %v404 = vpop.permute.xlu0 %403
          %405 = vset.pattern.permute.xlu0 0
          %406 = vperm.xlu0 %405, %v362
          %v407 = vpop.permute.xlu0 %406
          %408 = vset.pattern.permute.xlu0 0
          %409 = vperm.xlu0 %408, %v363
          %v410 = vpop.permute.xlu0 %409
          %411 = vset.pattern.permute.xlu0 0
          %412 = vperm.xlu0 %411, %v364
          %v413 = vpop.permute.xlu0 %412
          %414 = vset.pattern.permute.xlu0 0
          %415 = vperm.xlu0 %414, %v365
          %v416 = vpop.permute.xlu0 %415
          %vm417 = vcmp.eq.s32.totalorder %v371, %v367
          %vm418 = vcmp.eq.s32.totalorder %v371, %v368
          %vm419 = vcmp.eq.s32.totalorder %v374, %v367
          %vm420 = vcmp.eq.s32.totalorder %v374, %v368
          %vm421 = vcmp.eq.s32.totalorder %v377, %v367
          %vm422 = vcmp.eq.s32.totalorder %v377, %v368
          %vm423 = vcmp.eq.s32.totalorder %v380, %v367
          %vm424 = vcmp.eq.s32.totalorder %v380, %v368
          %vm425 = vcmp.eq.s32.totalorder %v383, %v367
          %vm426 = vcmp.eq.s32.totalorder %v383, %v368
          %vm427 = vcmp.eq.s32.totalorder %v386, %v367
          %vm428 = vcmp.eq.s32.totalorder %v386, %v368
          %vm429 = vcmp.eq.s32.totalorder %v389, %v367
          %vm430 = vcmp.eq.s32.totalorder %v389, %v368
          %vm431 = vcmp.eq.s32.totalorder %v392, %v367
          %vm432 = vcmp.eq.s32.totalorder %v392, %v368
          %vm433 = vcmp.eq.s32.totalorder %v395, %v367
          %vm434 = vcmp.eq.s32.totalorder %v395, %v368
          %vm435 = vcmp.eq.s32.totalorder %v398, %v367
          %vm436 = vcmp.eq.s32.totalorder %v398, %v368
          %vm437 = vcmp.eq.s32.totalorder %v401, %v367
          %vm438 = vcmp.eq.s32.totalorder %v401, %v368
          %vm439 = vcmp.eq.s32.totalorder %v404, %v367
          %vm440 = vcmp.eq.s32.totalorder %v404, %v368
          %vm441 = vcmp.eq.s32.totalorder %v407, %v367
          %vm442 = vcmp.eq.s32.totalorder %v407, %v368
          %vm443 = vcmp.eq.s32.totalorder %v410, %v367
          %vm444 = vcmp.eq.s32.totalorder %v410, %v368
          %vm445 = vcmp.eq.s32.totalorder %v413, %v367
          %vm446 = vcmp.eq.s32.totalorder %v413, %v368
          %vm447 = vcmp.eq.s32.totalorder %v416, %v367
          %vm448 = vcmp.eq.s32.totalorder %v416, %v368
          %v449 = vsel %vm417, 1, 0
          %v450 = vsel %vm418, 1, 0
          %v451 = vsel %vm419, 1, 0
          %v452 = vsel %vm420, 1, 0
          %v453 = vsel %vm421, 1, 0
          %v454 = vsel %vm422, 1, 0
          %v455 = vsel %vm423, 1, 0
          %v456 = vsel %vm424, 1, 0
          %v457 = vsel %vm425, 1, 0
          %v458 = vsel %vm426, 1, 0
          %v459 = vsel %vm427, 1, 0
          %v460 = vsel %vm428, 1, 0
          %v461 = vsel %vm429, 1, 0
          %v462 = vsel %vm430, 1, 0
          %v463 = vsel %vm431, 1, 0
          %v464 = vsel %vm432, 1, 0
          %v465 = vsel %vm433, 1, 0
          %v466 = vsel %vm434, 1, 0
          %v467 = vsel %vm435, 1, 0
          %v468 = vsel %vm436, 1, 0
          %v469 = vsel %vm437, 1, 0
          %v470 = vsel %vm438, 1, 0
          %v471 = vsel %vm439, 1, 0
          %v472 = vsel %vm440, 1, 0
          %v473 = vsel %vm441, 1, 0
          %v474 = vsel %vm442, 1, 0
          %v475 = vsel %vm443, 1, 0
          %v476 = vsel %vm444, 1, 0
          %v477 = vsel %vm445, 1, 0
          %v478 = vsel %vm446, 1, 0
          %v479 = vsel %vm447, 1, 0
          %v480 = vsel %vm448, 1, 0
          %v481 = vcvt.s32.f32 %v449
          %v482 = vcvt.s32.f32 %v450
          %v483 = vcvt.s32.f32 %v451
          %v484 = vcvt.s32.f32 %v452
          %v485 = vcvt.s32.f32 %v453
          %v486 = vcvt.s32.f32 %v454
          %v487 = vcvt.s32.f32 %v455
          %v488 = vcvt.s32.f32 %v456
          %v489 = vcvt.s32.f32 %v457
          %v490 = vcvt.s32.f32 %v458
          %v491 = vcvt.s32.f32 %v459
          %v492 = vcvt.s32.f32 %v460
          %v493 = vcvt.s32.f32 %v461
          %v494 = vcvt.s32.f32 %v462
          %v495 = vcvt.s32.f32 %v463
          %v496 = vcvt.s32.f32 %v464
          %v497 = vcvt.s32.f32 %v465
          %v498 = vcvt.s32.f32 %v466
          %v499 = vcvt.s32.f32 %v467
          %v500 = vcvt.s32.f32 %v468
          %v501 = vcvt.s32.f32 %v469
          %v502 = vcvt.s32.f32 %v470
          %v503 = vcvt.s32.f32 %v471
          %v504 = vcvt.s32.f32 %v472
          %v505 = vcvt.s32.f32 %v473
          %v506 = vcvt.s32.f32 %v474
          %v507 = vcvt.s32.f32 %v475
          %v508 = vcvt.s32.f32 %v476
          %v509 = vcvt.s32.f32 %v477
          %v510 = vcvt.s32.f32 %v478
          %v511 = vcvt.s32.f32 %v479
          %v512 = vcvt.s32.f32 %v480
          %v513 = vld [vmem:[#allocation2] sm:$0xff]
          %v514 = vld [vmem:[%s310] sm:$0xf]
          %515 = vmatprep.subr.mxu0 %v482
          %516 = vmatpush1.msra.mxu0 %v481
          %517 = vmatprep.subr.mxu0 %v484
          %518 = vmatpush1.msra.mxu0 %v483
          %519 = vmatprep.subr.mxu0 %v486
          %520 = vmatpush1.msra.mxu0 %v485
          %521 = vmatprep.subr.mxu0 %v488
          %522 = vmatpush1.msra.mxu0 %v487
          %523 = vmatprep.subr.mxu0 %v490
          %524 = vmatpush1.msra.mxu0 %v489
          %525 = vmatprep.subr.mxu0 %v492
          %526 = vmatpush1.msra.mxu0 %v491
          %527 = vmatprep.subr.mxu0 %v494
          %528 = vmatpush1.msra.mxu0 %v493
          %529 = vmatprep.subr.mxu0 %v496
          %530 = vmatpush1.msra.mxu0 %v495
          %531 = vmatprep.subr.mxu0 %v498
          %532 = vmatpush1.msra.mxu0 %v497
          %533 = vmatprep.subr.mxu0 %v500
          %534 = vmatpush1.msra.mxu0 %v499
          %535 = vmatprep.subr.mxu0 %v502
          %536 = vmatpush1.msra.mxu0 %v501
          %537 = vmatprep.subr.mxu0 %v504
          %538 = vmatpush1.msra.mxu0 %v503
          %539 = vmatprep.subr.mxu0 %v506
          %540 = vmatpush1.msra.mxu0 %v505
          %541 = vmatprep.subr.mxu0 %v508
          %542 = vmatpush1.msra.mxu0 %v507
          %543 = vmatprep.subr.mxu0 %v510
          %544 = vmatpush1.msra.mxu0 %v509
          %545 = vmatprep.subr.mxu0 %v512
          %546 = vmatpush1.msra.mxu0 %v511
          %547 = vmatprep.subr.mxu0 0.0
          %548 = vmatpush1.msra.mxu0 0.0
          %549 = vmatprep.subr.mxu0 0.0
          %550 = vmatpush1.msra.mxu0 0.0
          %551 = vmatprep.subr.mxu0 0.0
          %552 = vmatpush1.msra.mxu0 0.0
          %553 = vmatprep.subr.mxu0 0.0
          %554 = vmatpush1.msra.mxu0 0.0
          %555 = vmatprep.subr.mxu0 0.0
          %556 = vmatpush1.msra.mxu0 0.0
          %557 = vmatprep.subr.mxu0 0.0
          %558 = vmatpush1.msra.mxu0 0.0
          %559 = vmatprep.subr.mxu0 0.0
          %560 = vmatpush1.msra.mxu0 0.0
          %561 = vmatprep.subr.mxu0 0.0
          %562 = vmatpush1.msra.mxu0 0.0
          %563 = vmatprep.subr.mxu0 0.0
          %564 = vmatpush1.msra.mxu0 0.0
          %565 = vmatprep.subr.mxu0 0.0
          %566 = vmatpush1.msra.mxu0 0.0
          %567 = vmatprep.subr.mxu0 0.0
          %568 = vmatpush1.msra.mxu0 0.0
          %569 = vmatprep.subr.mxu0 0.0
          %570 = vmatpush1.msra.mxu0 0.0
          %571 = vmatprep.subr.mxu0 0.0
          %572 = vmatpush1.msra.mxu0 0.0
          %573 = vmatprep.subr.mxu0 0.0
          %574 = vmatpush1.msra.mxu0 0.0
          %575 = vmatprep.subr.mxu0 0.0
          %576 = vmatpush1.msra.mxu0 0.0
          %577 = vmatprep.subr.mxu0 0.0
          %578 = vmatpush1.msra.mxu0 0.0
          %579 = vmatprep.mubr.f32.mxu0 0.0
          %580 = vmatmul.mubr.f32.gmra.mrb[0].mxu0 %v514
          %v581 = vpop.f32.mrb[0].mxu0
          %v582 = vadd.f32 0.0, %v581
          %v583 = vpop.f32.mrb[0].mxu0
          %v584 = vadd.f32 0.0, %v583
          %585 = vdwg.mxu0
          %v588 = vcombine.low %v582, %v584
          %v590 = vadd.f32 %v513, %v588
          %591 = vst [vmem:[#allocation2] sm:$0xff] %v590
        $region36: #{tpu_custom_call.1} parent=27 // pred_fallthru
          _
        // Predicated region
        $region37: #{tpu_custom_call.1} parent=27 // pred_check
          %p592 = pneg %p321
        $region38: #{tpu_custom_call.1} parent=27 // pred_check_branch
          %594 = sbr.rel (%p592) target = $region40
        $region39: #{tpu_custom_call.1} parent=27 // pred_region
          %v595 = vld [vmem:[#allocation2] sm:$0xff]
          %596 = vst [vmem:[%s273] sm:$0xff] %v595
        $region40: #{tpu_custom_call.1} parent=27 // pred_fallthru
          _
        %s597 = sand.u32 %s145, 1
        %s598 = scalar_lea.sflag [#allocation7], %s597
        %s599 = sand.u32 %s145, 1
        %s600 = smul.addr %s599, 8
        %s601 = scalar_lea.vmem [#allocation6], %s600
        // Predicated region
        $region41: #{tpu_custom_call.1} parent=27 // pred_check
          %p602 = pneg %p155
        $region42: #{tpu_custom_call.1} parent=27 // pred_check_branch
          %604 = sbr.rel (%p602) target = $region44
        $region43: #{tpu_custom_call.1} parent=27 // pred_region
          %s605 = smul.u32 2, %s34
          %s607 = ssub.s32 128, 128
          %608 = vsyncadd %s598, %s607
          %s609 = smul.addr %s33, 2
          %s610 = sadd.s32 %s605, %s609
          %s611 = smul.addr %s610, 64
          %s612 = scalar_lea.hbm %s4, %s611
          %s614 = sshll.u32 %s601, 4
          %s615 = int_to_ptr.vmem [resolvable:$true] %s614
          %617 = dma.vmem_to_hbm [thread:$0]  %s615, 128, %s612, %s598
        $region44: #{tpu_custom_call.1} parent=27 // pred_fallthru
          _
      $region28: #{tpu_custom_call.1} parent=5 // pred_fallthru
        _
      %p618 = scmp.le.s32.totalorder 2, %s23
      // Predicated region
      $region45: #{tpu_custom_call.1} parent=5 // pred_check
        %p619 = pneg %p618
      $region46: #{tpu_custom_call.1} parent=5 // pred_check_branch
        %621 = sbr.rel (%p619) target = $region48
      $region47: #{tpu_custom_call.1} parent=5 // pred_region
        %s622 = ssub.s32 %s23, 2
        // Predicated region
        $region49: #{tpu_custom_call.1} parent=47 // pred_check
          %p623 = pneg %p161
        $region50: #{tpu_custom_call.1} parent=47 // pred_check_branch
          %625 = sbr.rel (%p623) target = $region52
        $region51: #{tpu_custom_call.1} parent=47 // pred_region
          %s626 = sand.u32 %s146, 1
          %s627 = scalar_lea.sflag [#allocation7], %s626
          %s628 = sand.u32 %s146, 1
          %s629 = smul.addr %s628, 8
          %s630 = scalar_lea.vmem [#allocation6], %s629
          %631 = dma.done %s627, 128
        $region52: #{tpu_custom_call.1} parent=47 // pred_fallthru
          _
      $region48: #{tpu_custom_call.1} parent=5 // pred_fallthru
        _
    $region6: #{tpu_custom_call.1} parent=1 // loop_footer
      %s27 = sadd.s32 1, %s23
    $region7: #{tpu_custom_call.1} parent=1 // loop_footer_branch
      %22 = sbr.rel target = $region3
    $region8: #{tpu_custom_call.1} parent=1 // loop_exit
      _
    %632 = vsyncpa [#allocation7], 1
    %s633 = scalar_lea.sflag [#allocation7], 1
    %634 = vsyncpa %s633, 1

</llo_original>
